<compile_context>
chip_gen: v5e
topology: v5e:2x2
jax: 0.10.0
libtpu: 0.0.40
codegen_flags: <defaults>
</compile_context>

<pallas_src>
import functools

import jax
import jax.numpy as jnp
from jax.experimental import pallas as pl
from jax.experimental.pallas import tpu as pltpu


def _round_up(v, m):
    return ((v + m - 1) // m) * m


# ----------------------------------------------------------------------------
# Kernel
# ----------------------------------------------------------------------------
def _qnet_kernel(x_ref,
                 w1_ref, b1_ref,
                 w2_ref, b2_ref,
                 w3_ref, b3_ref,
                 w4_ref, b4_ref,
                 out_ref):
    """Fused (x@W+b -> relu) x3 -> x@W4+b4 for one (TB, X_pad) batch tile.

    Matmuls run on the MXU with bf16 operands and f32 accumulation; the
    bias-add / ReLU epilogue stays in f32.
    """
    h = jnp.dot(x_ref[...], w1_ref[...], preferred_element_type=jnp.float32)
    h = jnp.maximum(h + b1_ref[...], 0.0)

    h = jnp.dot(h.astype(jnp.bfloat16), w2_ref[...],
                preferred_element_type=jnp.float32)
    h = jnp.maximum(h + b2_ref[...], 0.0)

    h = jnp.dot(h.astype(jnp.bfloat16), w3_ref[...],
                preferred_element_type=jnp.float32)
    h = jnp.maximum(h + b3_ref[...], 0.0)

    out_ref[...] = (jnp.dot(h.astype(jnp.bfloat16), w4_ref[...],
                            preferred_element_type=jnp.float32)
                    + b4_ref[...])


# ----------------------------------------------------------------------------
# Parameter prep: lane-pad to multiples of 128, cast weights to bf16.
# ----------------------------------------------------------------------------
def prepare_params(params):
    """Zero-pad all layer widths to multiples of 128 and cast weights to bf16.

    Weights are stored (in_features, out_features) = transpose of PyTorch's
    Linear weight; biases are (1, out_features) and stay f32 for the epilogue.
    """
    prepped = {}
    for i in (1, 2, 3, 4):
        w = params[f"w{i}"]
        b = params[f"b{i}"]
        fi, fo = w.shape
        fi_p, fo_p = _round_up(fi, 128), _round_up(fo, 128)
        prepped[f"w{i}"] = jnp.pad(
            w, ((0, fi_p - fi), (0, fo_p - fo))).astype(jnp.bfloat16)
        prepped[f"b{i}"] = jnp.pad(
            b, ((0, 0), (0, fo_p - fo))).astype(jnp.float32)
    return prepped


# ----------------------------------------------------------------------------
# Forward wrapper
# ----------------------------------------------------------------------------
@functools.partial(jax.jit, static_argnames=("z_dim",))
def qnet_forward(x, p, *, z_dim):
    """x: (B, X_dim) float32.  p: prepared (padded) params.  Returns (B, z_dim)."""
    B, X_dim = x.shape
    X_pad = p["w1"].shape[0]
    Z_pad = p["w4"].shape[1]

    # Batch tile: fill the MXU rows / amortize per-step overhead when B is
    # large; shrink to the (8-aligned) padded batch when B is small so we
    # don't burn compute on padding rows.
    TB = 128 if B >= 128 else _round_up(B, 8)
    B_pad = _round_up(B, TB)

    x_p = jnp.pad(x, ((0, B_pad - B), (0, X_pad - X_dim))).astype(jnp.bfloat16)

    grid = (B_pad // TB,)

    # Activations: one (TB, *) row tile per grid step (pipelined).
    x_spec = pl.BlockSpec((TB, X_pad), lambda i: (i, 0))
    out_spec = pl.BlockSpec((TB, Z_pad), lambda i: (i, 0))

    # Weights / biases: constant block index -> fetched once, VMEM-resident
    # across all grid steps.  (Per-operand closure avoids late-binding bugs.)
    def resident_spec(arr):
        ndim = arr.ndim
        return pl.BlockSpec(arr.shape, lambda i, _n=ndim: (0,) * _n)

    in_specs = [
        x_spec,
        resident_spec(p["w1"]), resident_spec(p["b1"]),
        resident_spec(p["w2"]), resident_spec(p["b2"]),
        resident_spec(p["w3"]), resident_spec(p["b3"]),
        resident_spec(p["w4"]), resident_spec(p["b4"]),
    ]

    out_padded = pl.pallas_call(
        _qnet_kernel,
        out_shape=jax.ShapeDtypeStruct((B_pad, Z_pad), jnp.float32),
        grid=grid,
        in_specs=in_specs,
        out_specs=out_spec,
        compiler_params=pltpu.CompilerParams(
            dimension_semantics=("parallel",),   # megacore on v7x, no-op elsewhere
            vmem_limit_bytes=64 * 1024 * 1024,
        ),
    )(x_p,
      p["w1"], p["b1"],
      p["w2"], p["b2"],
      p["w3"], p["b3"],
      p["w4"], p["b4"])

    return out_padded[:B, :z_dim]


# ----------------------------------------------------------------------------
# Init + references
# ----------------------------------------------------------------------------
def init_params(key, X_dim, N, z_dim):
    """PyTorch-style Linear init: U(-1/sqrt(fan_in), 1/sqrt(fan_in)).

    Weights stored as (in, out) == transpose of PyTorch's (out, in)."""
    dims = [(X_dim, 250), (250, N), (N, N), (N, z_dim)]
    params = {}
    for i, (fan_in, fan_out) in enumerate(dims, start=1):
        key, kw, kb = jax.random.split(key, 3)
        bound = 1.0 / (fan_in ** 0.5)
        params[f"w{i}"] = jax.random.uniform(
            kw, (fan_in, fan_out), jnp.float32, -bound, bound)
        params[f"b{i}"] = jax.random.uniform(
            kb, (1, fan_out), jnp.float32, -bound, bound)
    return params


def qnet_reference_f32(x, params):
    h = jnp.maximum(x @ params["w1"] + params["b1"], 0.0)
    h = jnp.maximum(h @ params["w2"] + params["b2"], 0.0)
    h = jnp.maximum(h @ params["w3"] + params["b3"], 0.0)
    return h @ params["w4"] + params["b4"]


def qnet_reference_bf16(x, params):
    """Same math as the kernel: bf16 matmul operands, f32 accumulate/epilogue."""
    def layer(h, w, b, act):
        y = jnp.dot(h.astype(jnp.bfloat16), w.astype(jnp.bfloat16),
                    preferred_element_type=jnp.float32) + b
        return jnp.maximum(y, 0.0) if act else y
    h = layer(x, params["w1"], params["b1"], True)
    h = layer(h, params["w2"], params["b2"], True)
    h = layer(h, params["w3"], params["b3"], True)
    return layer(h, params["w4"], params["b4"], False)


# ----------------------------------------------------------------------------
# Self-test
# ----------------------------------------------------------------------------
if __name__ == "__main__":
    X_dim, N, z_dim = 32, 64, 8
    batch = 8

    key = jax.random.PRNGKey(0)
    key, kx = jax.random.split(key)
    x = jax.random.normal(kx, (batch, X_dim), jnp.float32)
    params = init_params(key, X_dim, N, z_dim)
    prepped = prepare_params(params)

    out = qnet_forward(x, prepped, z_dim=z_dim)
    out = jax.block_until_ready(out)

    assert out.shape == (batch, z_dim), out.shape

    ref_bf16 = qnet_reference_bf16(x, params)   # same precision recipe as kernel
    ref_f32 = qnet_reference_f32(x, params)     # full-f32 sanity check
    assert jnp.allclose(out, ref_bf16, atol=3e-3, rtol=3e-3), "mismatch vs bf16 ref"
    assert jnp.allclose(out, ref_f32, atol=6e-2, rtol=6e-2), "mismatch vs f32 ref"

    print("KERNEL_OK")
</pallas_src>

<mosaic_0001>
module attributes {stable_mosaic.version = 11 : i64} {
  func.func @_qnet_kernel(%arg0: i32, %arg1: memref<8x128xbf16, #tpu.memory_space<vmem>>, %arg2: memref<128x256xbf16, #tpu.memory_space<vmem>>, %arg3: memref<1x256xf32, #tpu.memory_space<vmem>>, %arg4: memref<256x128xbf16, #tpu.memory_space<vmem>>, %arg5: memref<1x128xf32, #tpu.memory_space<vmem>>, %arg6: memref<128x128xbf16, #tpu.memory_space<vmem>>, %arg7: memref<1x128xf32, #tpu.memory_space<vmem>>, %arg8: memref<128x128xbf16, #tpu.memory_space<vmem>>, %arg9: memref<1x128xf32, #tpu.memory_space<vmem>>, %arg10: memref<8x128xf32, #tpu.memory_space<vmem>>) attributes {dimension_semantics = [#tpu.dimension_semantics<parallel>], iteration_bounds = array<i64: 1>, scalar_prefetch = 0 : i64, scratch_operands = 0 : i64, tpu.core_type = #tpu.core_type<tc>, window_params = [{transform_indices = @transform_0, window_bounds = array<i64: 8, 128>}, {pipeline_mode = #tpu.pipeline_mode<synchronous>, transform_indices = @transform_1, window_bounds = array<i64: 128, 256>}, {pipeline_mode = #tpu.pipeline_mode<synchronous>, transform_indices = @transform_2, window_bounds = array<i64: 1, 256>}, {pipeline_mode = #tpu.pipeline_mode<synchronous>, transform_indices = @transform_3, window_bounds = array<i64: 256, 128>}, {pipeline_mode = #tpu.pipeline_mode<synchronous>, transform_indices = @transform_4, window_bounds = array<i64: 1, 128>}, {pipeline_mode = #tpu.pipeline_mode<synchronous>, transform_indices = @transform_5, window_bounds = array<i64: 128, 128>}, {pipeline_mode = #tpu.pipeline_mode<synchronous>, transform_indices = @transform_6, window_bounds = array<i64: 1, 128>}, {pipeline_mode = #tpu.pipeline_mode<synchronous>, transform_indices = @transform_7, window_bounds = array<i64: 128, 128>}, {pipeline_mode = #tpu.pipeline_mode<synchronous>, transform_indices = @transform_8, window_bounds = array<i64: 1, 128>}, {transform_indices = @transform_9, window_bounds = array<i64: 8, 128>}]} {
    %c0 = arith.constant 0 : index
    %c0_0 = arith.constant 0 : index
    %0 = vector.load %arg1[%c0, %c0_0] : memref<8x128xbf16, #tpu.memory_space<vmem>>, vector<8x128xbf16>
    %c0_1 = arith.constant 0 : index
    %c0_2 = arith.constant 0 : index
    %1 = vector.load %arg2[%c0_1, %c0_2] : memref<128x256xbf16, #tpu.memory_space<vmem>>, vector<128x256xbf16>
    %cst = arith.constant dense<0.000000e+00> : vector<8x256xf32>
    %2 = tpu.matmul %0, %1, %cst {dimension_numbers = #tpu.dot_dimension_numbers<[1], [0], [0], [1], [0, 0, 1, 1], [], []>} : vector<8x128xbf16>, vector<128x256xbf16>, vector<8x256xf32> -> vector<8x256xf32>
    %c0_3 = arith.constant 0 : index
    %c0_4 = arith.constant 0 : index
    %3 = vector.load %arg3[%c0_3, %c0_4] : memref<1x256xf32, #tpu.memory_space<vmem>>, vector<1x256xf32>
    %4 = vector.broadcast %3 : vector<1x256xf32> to vector<8x256xf32>
    %5 = arith.addf %2, %4 : vector<8x256xf32>
    %cst_5 = arith.constant 0.000000e+00 : f32
    %6 = vector.broadcast %cst_5 : f32 to vector<8x256xf32>
    %7 = arith.maximumf %5, %6 : vector<8x256xf32>
    %8 = arith.truncf %7 : vector<8x256xf32> to vector<8x256xbf16>
    %c0_6 = arith.constant 0 : index
    %c0_7 = arith.constant 0 : index
    %9 = vector.load %arg4[%c0_6, %c0_7] : memref<256x128xbf16, #tpu.memory_space<vmem>>, vector<256x128xbf16>
    %cst_8 = arith.constant dense<0.000000e+00> : vector<8x128xf32>
    %10 = tpu.matmul %8, %9, %cst_8 {dimension_numbers = #tpu.dot_dimension_numbers<[1], [0], [0], [1], [0, 0, 1, 1], [], []>} : vector<8x256xbf16>, vector<256x128xbf16>, vector<8x128xf32> -> vector<8x128xf32>
    %c0_9 = arith.constant 0 : index
    %c0_10 = arith.constant 0 : index
    %11 = vector.load %arg5[%c0_9, %c0_10] : memref<1x128xf32, #tpu.memory_space<vmem>>, vector<1x128xf32>
    %12 = vector.broadcast %11 : vector<1x128xf32> to vector<8x128xf32>
    %13 = arith.addf %10, %12 : vector<8x128xf32>
    %cst_11 = arith.constant 0.000000e+00 : f32
    %14 = vector.broadcast %cst_11 : f32 to vector<8x128xf32>
    %15 = arith.maximumf %13, %14 : vector<8x128xf32>
    %16 = arith.truncf %15 : vector<8x128xf32> to vector<8x128xbf16>
    %c0_12 = arith.constant 0 : index
    %c0_13 = arith.constant 0 : index
    %17 = vector.load %arg6[%c0_12, %c0_13] : memref<128x128xbf16, #tpu.memory_space<vmem>>, vector<128x128xbf16>
    %cst_14 = arith.constant dense<0.000000e+00> : vector<8x128xf32>
    %18 = tpu.matmul %16, %17, %cst_14 {dimension_numbers = #tpu.dot_dimension_numbers<[1], [0], [0], [1], [0, 0, 1, 1], [], []>} : vector<8x128xbf16>, vector<128x128xbf16>, vector<8x128xf32> -> vector<8x128xf32>
    %c0_15 = arith.constant 0 : index
    %c0_16 = arith.constant 0 : index
    %19 = vector.load %arg7[%c0_15, %c0_16] : memref<1x128xf32, #tpu.memory_space<vmem>>, vector<1x128xf32>
    %20 = vector.broadcast %19 : vector<1x128xf32> to vector<8x128xf32>
    %21 = arith.addf %18, %20 : vector<8x128xf32>
    %cst_17 = arith.constant 0.000000e+00 : f32
    %22 = vector.broadcast %cst_17 : f32 to vector<8x128xf32>
    %23 = arith.maximumf %21, %22 : vector<8x128xf32>
    %24 = arith.truncf %23 : vector<8x128xf32> to vector<8x128xbf16>
    %c0_18 = arith.constant 0 : index
    %c0_19 = arith.constant 0 : index
    %25 = vector.load %arg8[%c0_18, %c0_19] : memref<128x128xbf16, #tpu.memory_space<vmem>>, vector<128x128xbf16>
    %cst_20 = arith.constant dense<0.000000e+00> : vector<8x128xf32>
    %26 = tpu.matmul %24, %25, %cst_20 {dimension_numbers = #tpu.dot_dimension_numbers<[1], [0], [0], [1], [0, 0, 1, 1], [], []>} : vector<8x128xbf16>, vector<128x128xbf16>, vector<8x128xf32> -> vector<8x128xf32>
    %c0_21 = arith.constant 0 : index
    %c0_22 = arith.constant 0 : index
    %27 = vector.load %arg9[%c0_21, %c0_22] : memref<1x128xf32, #tpu.memory_space<vmem>>, vector<1x128xf32>
    %28 = vector.broadcast %27 : vector<1x128xf32> to vector<8x128xf32>
    %29 = arith.addf %26, %28 : vector<8x128xf32>
    %c0_23 = arith.constant 0 : index
    %c0_24 = arith.constant 0 : index
    %30 = vector.load %arg10[%c0_23, %c0_24] : memref<8x128xf32, #tpu.memory_space<vmem>>, vector<8x128xf32>
    tpu.vector_store %arg10[%c0_23, %c0_24], %29 {strides = array<i32>} : memref<8x128xf32, #tpu.memory_space<vmem>>, vector<8x128xf32>,
    return
  }
  func.func @transform_0(%arg0: i32) -> (i32, i32) {
    %c0_i32 = arith.constant 0 : i32
    %c0_i32_0 = arith.constant 0 : i32
    return %arg0, %c0_i32 : i32, i32
  }
  func.func @transform_1(%arg0: i32) -> (i32, i32) {
    %c0_i32 = arith.constant 0 : i32
    %c0_i32_0 = arith.constant 0 : i32
    %c0_i32_1 = arith.constant 0 : i32
    return %c0_i32, %c0_i32_0 : i32, i32
  }
  func.func @transform_2(%arg0: i32) -> (i32, i32) {
    %c0_i32 = arith.constant 0 : i32
    %c0_i32_0 = arith.constant 0 : i32
    %c0_i32_1 = arith.constant 0 : i32
    return %c0_i32, %c0_i32_0 : i32, i32
  }
  func.func @transform_3(%arg0: i32) -> (i32, i32) {
    %c0_i32 = arith.constant 0 : i32
    %c0_i32_0 = arith.constant 0 : i32
    %c0_i32_1 = arith.constant 0 : i32
    return %c0_i32, %c0_i32_0 : i32, i32
  }
  func.func @transform_4(%arg0: i32) -> (i32, i32) {
    %c0_i32 = arith.constant 0 : i32
    %c0_i32_0 = arith.constant 0 : i32
    %c0_i32_1 = arith.constant 0 : i32
    return %c0_i32, %c0_i32_0 : i32, i32
  }
  func.func @transform_5(%arg0: i32) -> (i32, i32) {
    %c0_i32 = arith.constant 0 : i32
    %c0_i32_0 = arith.constant 0 : i32
    %c0_i32_1 = arith.constant 0 : i32
    return %c0_i32, %c0_i32_0 : i32, i32
  }
  func.func @transform_6(%arg0: i32) -> (i32, i32) {
    %c0_i32 = arith.constant 0 : i32
    %c0_i32_0 = arith.constant 0 : i32
    %c0_i32_1 = arith.constant 0 : i32
    return %c0_i32, %c0_i32_0 : i32, i32
  }
  func.func @transform_7(%arg0: i32) -> (i32, i32) {
    %c0_i32 = arith.constant 0 : i32
    %c0_i32_0 = arith.constant 0 : i32
    %c0_i32_1 = arith.constant 0 : i32
    return %c0_i32, %c0_i32_0 : i32, i32
  }
  func.func @transform_8(%arg0: i32) -> (i32, i32) {
    %c0_i32 = arith.constant 0 : i32
    %c0_i32_0 = arith.constant 0 : i32
    %c0_i32_1 = arith.constant 0 : i32
    return %c0_i32, %c0_i32_0 : i32, i32
  }
  func.func @transform_9(%arg0: i32) -> (i32, i32) {
    %c0_i32 = arith.constant 0 : i32
    %c0_i32_0 = arith.constant 0 : i32
    return %arg0, %c0_i32 : i32, i32
  }
}

</mosaic_0001>

<llo_original>
// kernel: qnet_forward.1
$region0: #{qnet_forward.1}
  #allocation0 [shape = 'u32[]', space=smem, size = 0x4, offset = 0x4, fixed_abs, tag = 'smem constant byte address 0x4 - core index']
  #allocation1 [shape = 'u32[72,128]{1,0:T(1,128)}', space=vmem, size = 0x9000, scoped, tag = 'internal scratch']
  %s0 = inlined_call_operand.vmem [shape: bf16[8,128], index: 0, kind: input, shape index: {}]
  %s1 = inlined_call_operand.hbm [shape: bf16[128,256], index: 1, kind: input, shape index: {}]
  %s2 = inlined_call_operand.vmem [shape: f32[1,256], index: 2, kind: input, shape index: {}]
  %s3 = inlined_call_operand.hbm [shape: bf16[256,128], index: 3, kind: input, shape index: {}]
  %s4 = inlined_call_operand.vmem [shape: f32[1,128], index: 4, kind: input, shape index: {}]
  %s5 = inlined_call_operand.hbm [shape: bf16[128,128], index: 5, kind: input, shape index: {}]
  %s6 = inlined_call_operand.vmem [shape: f32[1,128], index: 6, kind: input, shape index: {}]
  %s7 = inlined_call_operand.hbm [shape: bf16[128,128], index: 7, kind: input, shape index: {}]
  %s8 = inlined_call_operand.vmem [shape: f32[1,128], index: 8, kind: input, shape index: {}]
  %s9 = inlined_call_operand.hbm [shape: f32[8,128], index: 9, kind: output, shape index: {}]
  %s10 = sld [smem:[#allocation0]]
  $region62: #{qnet_forward.1} parent=0
    _
  %s12 = ssub.s32 1, %s10
  %s13 = scalar_select 0, %s12, %s10
  $region1: #{qnet_forward.1} parent=0
    #allocation2 [shape = 'u8[65536]{0}', space=vmem, size = 0x10000, scoped, tag = 'input window, operand 1, single buffered']
    #allocation3 [shape = 's32[1]{0}', space=sflag, size = 0x4, scoped, tag = 'scoped memory for qnet_forward.1']
    #allocation4 [shape = 's32[1]{0}', space=sflag, size = 0x4, scoped, tag = 'scoped memory for qnet_forward.1']
    #allocation5 [shape = 'u8[65536]{0}', space=vmem, size = 0x10000, scoped, tag = 'input window, operand 3, single buffered']
    #allocation6 [shape = 's32[1]{0}', space=sflag, size = 0x4, scoped, tag = 'scoped memory for qnet_forward.1']
    #allocation7 [shape = 'u8[32768]{0}', space=vmem, size = 0x8000, scoped, tag = 'input window, operand 5, single buffered']
    #allocation8 [shape = 'u8[32768]{0}', space=vmem, size = 0x8000, scoped, tag = 'input window, operand 7, single buffered']
    #allocation9 [shape = 's32[1]{0}', space=sflag, size = 0x4, scoped, tag = 'scoped memory for qnet_forward.1']
    #allocation10 [shape = 'u8[4096]{0}', space=vmem, size = 0x1000, scoped, tag = 'output window, operand 0, single buffered']
    %14 = vsyncpa [#allocation3], 0
    %15 = vsyncpa [#allocation6], 0
    %16 = vsyncpa [#allocation9], 0
    %17 = vsyncpa [#allocation4], 0
    // Predicated region
    $region2: #{qnet_forward.1} parent=1 // pred_check
      _
    $region3: #{qnet_forward.1} parent=1 // pred_check_branch
      %19 = sbr.rel (0) target = $region5
    $region4: #{qnet_forward.1} parent=1 // pred_region
      _
    $region5: #{qnet_forward.1} parent=1 // pred_fallthru
      _
    // Predicated region
    $region6: #{qnet_forward.1} parent=1 // pred_check
      _
    $region7: #{qnet_forward.1} parent=1 // pred_check_branch
      %21 = sbr.rel (0) target = $region9
    $region8: #{qnet_forward.1} parent=1 // pred_region
      %23 = vsyncadd [#allocation3], 0
      %s24 = sshll.u32 %s1, 4
      %s25 = int_to_ptr.hbm [resolvable:$true] %s24
      %s26 = sshll.u32 [#allocation2], 4
      %s27 = int_to_ptr.vmem [resolvable:$true] %s26
      %32 = dma.hbm_to_vmem [thread:$0]  %s25, 2048, %s27, [#allocation3], 128, 128, 8
    $region9: #{qnet_forward.1} parent=1 // pred_fallthru
      _
    // Predicated region
    $region10: #{qnet_forward.1} parent=1 // pred_check
      _
    $region11: #{qnet_forward.1} parent=1 // pred_check_branch
      %34 = sbr.rel (0) target = $region13
    $region12: #{qnet_forward.1} parent=1 // pred_region
      _
    $region13: #{qnet_forward.1} parent=1 // pred_fallthru
      _
    // Predicated region
    $region14: #{qnet_forward.1} parent=1 // pred_check
      _
    $region15: #{qnet_forward.1} parent=1 // pred_check_branch
      %36 = sbr.rel (0) target = $region17
    $region16: #{qnet_forward.1} parent=1 // pred_region
      %38 = vsyncadd [#allocation6], 0
      %s39 = sshll.u32 %s3, 4
      %s40 = int_to_ptr.hbm [resolvable:$true] %s39
      %s41 = sshll.u32 [#allocation5], 4
      %s42 = int_to_ptr.vmem [resolvable:$true] %s41
      %47 = dma.hbm_to_vmem [thread:$0]  %s40, 2048, %s42, [#allocation6], 64, 64, 4
    $region17: #{qnet_forward.1} parent=1 // pred_fallthru
      _
    // Predicated region
    $region18: #{qnet_forward.1} parent=1 // pred_check
      _
    $region19: #{qnet_forward.1} parent=1 // pred_check_branch
      %49 = sbr.rel (0) target = $region21
    $region20: #{qnet_forward.1} parent=1 // pred_region
      _
    $region21: #{qnet_forward.1} parent=1 // pred_fallthru
      _
    // Predicated region
    $region22: #{qnet_forward.1} parent=1 // pred_check
      _
    $region23: #{qnet_forward.1} parent=1 // pred_check_branch
      %51 = sbr.rel (0) target = $region25
    $region24: #{qnet_forward.1} parent=1 // pred_region
      %53 = vsyncadd [#allocation6], 0
      %s54 = sshll.u32 %s5, 4
      %s55 = int_to_ptr.hbm [resolvable:$true] %s54
      %s56 = sshll.u32 [#allocation7], 4
      %s57 = int_to_ptr.vmem [resolvable:$true] %s56
      %62 = dma.hbm_to_vmem [thread:$0]  %s55, 1024, %s57, [#allocation6], 64, 64, 4
    $region25: #{qnet_forward.1} parent=1 // pred_fallthru
      _
    // Predicated region
    $region26: #{qnet_forward.1} parent=1 // pred_check
      _
    $region27: #{qnet_forward.1} parent=1 // pred_check_branch
      %64 = sbr.rel (0) target = $region29
    $region28: #{qnet_forward.1} parent=1 // pred_region
      _
    $region29: #{qnet_forward.1} parent=1 // pred_fallthru
      _
    // Predicated region
    $region30: #{qnet_forward.1} parent=1 // pred_check
      _
    $region31: #{qnet_forward.1} parent=1 // pred_check_branch
      %66 = sbr.rel (0) target = $region33
    $region32: #{qnet_forward.1} parent=1 // pred_region
      %68 = vsyncadd [#allocation9], 0
      %s69 = sshll.u32 %s7, 4
      %s70 = int_to_ptr.hbm [resolvable:$true] %s69
      %s71 = sshll.u32 [#allocation8], 4
      %s72 = int_to_ptr.vmem [resolvable:$true] %s71
      %77 = dma.hbm_to_vmem [thread:$0]  %s70, 1024, %s72, [#allocation9], 64, 64, 4
    $region33: #{qnet_forward.1} parent=1 // pred_fallthru
      _
    // Predicated region
    $region34: #{qnet_forward.1} parent=1 // pred_check
      _
    $region35: #{qnet_forward.1} parent=1 // pred_check_branch
      %79 = sbr.rel (0) target = $region37
    $region36: #{qnet_forward.1} parent=1 // pred_region
      _
    $region37: #{qnet_forward.1} parent=1 // pred_fallthru
      _
    // Predicated region
    $region38: #{qnet_forward.1} parent=1 // pred_check
      _
    $region39: #{qnet_forward.1} parent=1 // pred_check_branch
      %81 = sbr.rel (0) target = $region41
    $region40: #{qnet_forward.1} parent=1 // pred_region
      %83 = dma.done [#allocation3], 2048
    $region41: #{qnet_forward.1} parent=1 // pred_fallthru
      _
    // Predicated region
    $region42: #{qnet_forward.1} parent=1 // pred_check
      _
    $region43: #{qnet_forward.1} parent=1 // pred_check_branch
      %85 = sbr.rel (0) target = $region45
    $region44: #{qnet_forward.1} parent=1 // pred_region
      %87 = dma.done [#allocation6], 2048
    $region45: #{qnet_forward.1} parent=1 // pred_fallthru
      _
    // Predicated region
    $region46: #{qnet_forward.1} parent=1 // pred_check
      _
    $region47: #{qnet_forward.1} parent=1 // pred_check_branch
      %89 = sbr.rel (0) target = $region49
    $region48: #{qnet_forward.1} parent=1 // pred_region
      %91 = dma.done [#allocation6], 1024
    $region49: #{qnet_forward.1} parent=1 // pred_fallthru
      _
    // Predicated region
    $region50: #{qnet_forward.1} parent=1 // pred_check
      _
    $region51: #{qnet_forward.1} parent=1 // pred_check_branch
      %93 = sbr.rel (0) target = $region53
    $region52: #{qnet_forward.1} parent=1 // pred_region
      %95 = dma.done [#allocation9], 1024
    $region53: #{qnet_forward.1} parent=1 // pred_fallthru
      _
    %v96 = vld [vmem:[%s0] sm:$0xf]
    %v97 = vld [vmem:[#allocation2] sm:$0xff]
    %v98 = vld [vmem:[#allocation2 + $0x8] sm:$0xff]
    %v99 = vld [vmem:[#allocation2 + $0x10] sm:$0xff]
    %v100 = vld [vmem:[#allocation2 + $0x18] sm:$0xff]
    %v101 = vld [vmem:[#allocation2 + $0x20] sm:$0xff]
    %v102 = vld [vmem:[#allocation2 + $0x28] sm:$0xff]
    %v103 = vld [vmem:[#allocation2 + $0x30] sm:$0xff]
    %v104 = vld [vmem:[#allocation2 + $0x38] sm:$0xff]
    %v105 = vld [vmem:[#allocation2 + $0x40] sm:$0xff]
    %v106 = vld [vmem:[#allocation2 + $0x48] sm:$0xff]
    %v107 = vld [vmem:[#allocation2 + $0x50] sm:$0xff]
    %v108 = vld [vmem:[#allocation2 + $0x58] sm:$0xff]
    %v109 = vld [vmem:[#allocation2 + $0x60] sm:$0xff]
    %v110 = vld [vmem:[#allocation2 + $0x68] sm:$0xff]
    %v111 = vld [vmem:[#allocation2 + $0x70] sm:$0xff]
    %v112 = vld [vmem:[#allocation2 + $0x78] sm:$0xff]
    %v113 = vld [vmem:[%s2] sm:$0x3]
    %v115 = vperm.slane %v113, 0
    %v116 = vperm.slane %v113, 1
    %v135 = vunpack.c.l.b16 %v97
    %v136 = vunpack.c.h.b16 %v97
    %v137 = vunpack.c.l.b16 %v98
    %v138 = vunpack.c.h.b16 %v98
    %v139 = vunpack.c.l.b16 %v99
    %v140 = vunpack.c.h.b16 %v99
    %v141 = vunpack.c.l.b16 %v100
    %v142 = vunpack.c.h.b16 %v100
    %v143 = vunpack.c.l.b16 %v101
    %v144 = vunpack.c.h.b16 %v101
    %v145 = vunpack.c.l.b16 %v102
    %v146 = vunpack.c.h.b16 %v102
    %v147 = vunpack.c.l.b16 %v103
    %v148 = vunpack.c.h.b16 %v103
    %v149 = vunpack.c.l.b16 %v104
    %v150 = vunpack.c.h.b16 %v104
    %v151 = vunpack.c.l.b16 %v105
    %v152 = vunpack.c.h.b16 %v105
    %v153 = vunpack.c.l.b16 %v106
    %v154 = vunpack.c.h.b16 %v106
    %v155 = vunpack.c.l.b16 %v107
    %v156 = vunpack.c.h.b16 %v107
    %v157 = vunpack.c.l.b16 %v108
    %v158 = vunpack.c.h.b16 %v108
    %v159 = vunpack.c.l.b16 %v109
    %v160 = vunpack.c.h.b16 %v109
    %v161 = vunpack.c.l.b16 %v110
    %v162 = vunpack.c.h.b16 %v110
    %v163 = vunpack.c.l.b16 %v111
    %v164 = vunpack.c.h.b16 %v111
    %v165 = vunpack.c.l.b16 %v112
    %v166 = vunpack.c.h.b16 %v112
    %v167 = vpack.c.b16 %v137, %v135
    %v168 = vpack.c.b16 %v138, %v136
    %v169 = vpack.c.b16 %v141, %v139
    %v170 = vpack.c.b16 %v142, %v140
    %v171 = vpack.c.b16 %v145, %v143
    %v172 = vpack.c.b16 %v146, %v144
    %v173 = vpack.c.b16 %v149, %v147
    %v174 = vpack.c.b16 %v150, %v148
    %v175 = vpack.c.b16 %v153, %v151
    %v176 = vpack.c.b16 %v154, %v152
    %v177 = vpack.c.b16 %v157, %v155
    %v178 = vpack.c.b16 %v158, %v156
    %v179 = vpack.c.b16 %v161, %v159
    %v180 = vpack.c.b16 %v162, %v160
    %v181 = vpack.c.b16 %v165, %v163
    %v182 = vpack.c.b16 %v166, %v164
    %199 = vmatpush.bf16.msra.mxu0 %v181
    %200 = vmatpush.bf16.msra.mxu0 %v179
    %201 = vmatpush.bf16.msra.mxu0 %v177
    %202 = vmatpush.bf16.msra.mxu0 %v175
    %203 = vmatpush.bf16.msra.mxu0 %v173
    %204 = vmatpush.bf16.msra.mxu0 %v171
    %205 = vmatpush.bf16.msra.mxu0 %v169
    %206 = vmatpush.bf16.msra.mxu0 %v167
    %207 = vmatmul.bf16.gmra.mxu0 %v96
    %v208 = vpop.f32.mrf.mxu0
    %v209 = vadd.f32 %v115, %v208
    %v210 = vpop.f32.mrf.mxu0
    %211 = vdwg.mxu0
    %212 = vmatpush.bf16.msra.mxu0 %v182
    %213 = vmatpush.bf16.msra.mxu0 %v180
    %214 = vmatpush.bf16.msra.mxu0 %v178
    %215 = vmatpush.bf16.msra.mxu0 %v176
    %216 = vmatpush.bf16.msra.mxu0 %v174
    %217 = vmatpush.bf16.msra.mxu0 %v172
    %218 = vmatpush.bf16.msra.mxu0 %v170
    %219 = vmatpush.bf16.msra.mxu0 %v168
    %220 = vmatmul.bf16.gmra.mxu0 %v96
    %v221 = vpop.f32.mrf.mxu0
    %v222 = vadd.f32 %v116, %v221
    %v223 = vpop.f32.mrf.mxu0
    %224 = vdwg.mxu0
    %v225 = vmax.f32 %v209, 0.0
    %v226 = vmax.f32 %v222, 0.0
    %v227 = vpack.c.bf16 %v225, %v225
    %v228 = vpack.c.bf16 %v226, %v226
    %v229 = vld [vmem:[#allocation5] sm:$0xf]
    %v230 = vld [vmem:[#allocation5 + $0x4] sm:$0xf]
    %v231 = vld [vmem:[#allocation5 + $0x8] sm:$0xf]
    %v232 = vld [vmem:[#allocation5 + $0xc] sm:$0xf]
    %v233 = vld [vmem:[#allocation5 + $0x10] sm:$0xf]
    %v234 = vld [vmem:[#allocation5 + $0x14] sm:$0xf]
    %v235 = vld [vmem:[#allocation5 + $0x18] sm:$0xf]
    %v236 = vld [vmem:[#allocation5 + $0x1c] sm:$0xf]
    %v237 = vld [vmem:[#allocation5 + $0x20] sm:$0xf]
    %v238 = vld [vmem:[#allocation5 + $0x24] sm:$0xf]
    %v239 = vld [vmem:[#allocation5 + $0x28] sm:$0xf]
    %v240 = vld [vmem:[#allocation5 + $0x2c] sm:$0xf]
    %v241 = vld [vmem:[#allocation5 + $0x30] sm:$0xf]
    %v242 = vld [vmem:[#allocation5 + $0x34] sm:$0xf]
    %v243 = vld [vmem:[#allocation5 + $0x38] sm:$0xf]
    %v244 = vld [vmem:[#allocation5 + $0x3c] sm:$0xf]
    %v245 = vld [vmem:[#allocation5 + $0x40] sm:$0xf]
    %v246 = vld [vmem:[#allocation5 + $0x44] sm:$0xf]
    %v247 = vld [vmem:[#allocation5 + $0x48] sm:$0xf]
    %v248 = vld [vmem:[#allocation5 + $0x4c] sm:$0xf]
    %v249 = vld [vmem:[#allocation5 + $0x50] sm:$0xf]
    %v250 = vld [vmem:[#allocation5 + $0x54] sm:$0xf]
    %v251 = vld [vmem:[#allocation5 + $0x58] sm:$0xf]
    %v252 = vld [vmem:[#allocation5 + $0x5c] sm:$0xf]
    %v253 = vld [vmem:[#allocation5 + $0x60] sm:$0xf]
    %v254 = vld [vmem:[#allocation5 + $0x64] sm:$0xf]
    %v255 = vld [vmem:[#allocation5 + $0x68] sm:$0xf]
    %v256 = vld [vmem:[#allocation5 + $0x6c] sm:$0xf]
    %v257 = vld [vmem:[#allocation5 + $0x70] sm:$0xf]
    %v258 = vld [vmem:[#allocation5 + $0x74] sm:$0xf]
    %v259 = vld [vmem:[#allocation5 + $0x78] sm:$0xf]
    %v260 = vld [vmem:[#allocation5 + $0x7c] sm:$0xf]
    %v261 = vld [vmem:[%s4] sm:$0x1]
    %v263 = vperm.slane %v261, 0
    %v297 = vunpack.c.l.b16 %v229
    %v298 = vunpack.c.l.b16 %v230
    %v299 = vunpack.c.l.b16 %v231
    %v300 = vunpack.c.l.b16 %v232
    %v301 = vunpack.c.l.b16 %v233
    %v302 = vunpack.c.l.b16 %v234
    %v303 = vunpack.c.l.b16 %v235
    %v304 = vunpack.c.l.b16 %v236
    %v305 = vunpack.c.l.b16 %v237
    %v306 = vunpack.c.l.b16 %v238
    %v307 = vunpack.c.l.b16 %v239
    %v308 = vunpack.c.l.b16 %v240
    %v309 = vunpack.c.l.b16 %v241
    %v310 = vunpack.c.l.b16 %v242
    %v311 = vunpack.c.l.b16 %v243
    %v312 = vunpack.c.l.b16 %v244
    %v313 = vunpack.c.l.b16 %v245
    %v314 = vunpack.c.l.b16 %v246
    %v315 = vunpack.c.l.b16 %v247
    %v316 = vunpack.c.l.b16 %v248
    %v317 = vunpack.c.l.b16 %v249
    %v318 = vunpack.c.l.b16 %v250
    %v319 = vunpack.c.l.b16 %v251
    %v320 = vunpack.c.l.b16 %v252
    %v321 = vunpack.c.l.b16 %v253
    %v322 = vunpack.c.l.b16 %v254
    %v323 = vunpack.c.l.b16 %v255
    %v324 = vunpack.c.l.b16 %v256
    %v325 = vunpack.c.l.b16 %v257
    %v326 = vunpack.c.l.b16 %v258
    %v327 = vunpack.c.l.b16 %v259
    %v328 = vunpack.c.l.b16 %v260
    %v329 = vpack.c.b16 %v298, %v297
    %v330 = vpack.c.b16 %v300, %v299
    %v331 = vpack.c.b16 %v302, %v301
    %v332 = vpack.c.b16 %v304, %v303
    %v333 = vpack.c.b16 %v306, %v305
    %v334 = vpack.c.b16 %v308, %v307
    %v335 = vpack.c.b16 %v310, %v309
    %v336 = vpack.c.b16 %v312, %v311
    %v337 = vpack.c.b16 %v314, %v313
    %v338 = vpack.c.b16 %v316, %v315
    %v339 = vpack.c.b16 %v318, %v317
    %v340 = vpack.c.b16 %v320, %v319
    %v341 = vpack.c.b16 %v322, %v321
    %v342 = vpack.c.b16 %v324, %v323
    %v343 = vpack.c.b16 %v326, %v325
    %v344 = vpack.c.b16 %v328, %v327
    %361 = vmatpush.bf16.msra.mxu0 %v336
    %362 = vmatpush.bf16.msra.mxu0 %v335
    %363 = vmatpush.bf16.msra.mxu0 %v334
    %364 = vmatpush.bf16.msra.mxu0 %v333
    %365 = vmatpush.bf16.msra.mxu0 %v332
    %366 = vmatpush.bf16.msra.mxu0 %v331
    %367 = vmatpush.bf16.msra.mxu0 %v330
    %368 = vmatpush.bf16.msra.mxu0 %v329
    %369 = vmatmul.bf16.gmra.mxu0 %v227
    %v370 = vpop.f32.mrf.mxu0
    %v371 = vadd.f32 %v263, %v370
    %v372 = vpop.f32.mrf.mxu0
    %373 = vdwg.mxu0
    %374 = vmatpush.bf16.msra.mxu0 %v344
    %375 = vmatpush.bf16.msra.mxu0 %v343
    %376 = vmatpush.bf16.msra.mxu0 %v342
    %377 = vmatpush.bf16.msra.mxu0 %v341
    %378 = vmatpush.bf16.msra.mxu0 %v340
    %379 = vmatpush.bf16.msra.mxu0 %v339
    %380 = vmatpush.bf16.msra.mxu0 %v338
    %381 = vmatpush.bf16.msra.mxu0 %v337
    %382 = vmatmul.bf16.gmra.mxu0 %v228
    %v383 = vpop.f32.mrf.mxu0
    %v384 = vadd.f32 %v371, %v383
    %v385 = vpop.f32.mrf.mxu0
    %386 = vdwg.mxu0
    %v387 = vmax.f32 %v384, 0.0
    %v388 = vpack.c.bf16 %v387, %v387
    %v389 = vld [vmem:[#allocation7] sm:$0xf]
    %v390 = vld [vmem:[#allocation7 + $0x4] sm:$0xf]
    %v391 = vld [vmem:[#allocation7 + $0x8] sm:$0xf]
    %v392 = vld [vmem:[#allocation7 + $0xc] sm:$0xf]
    %v393 = vld [vmem:[#allocation7 + $0x10] sm:$0xf]
    %v394 = vld [vmem:[#allocation7 + $0x14] sm:$0xf]
    %v395 = vld [vmem:[#allocation7 + $0x18] sm:$0xf]
    %v396 = vld [vmem:[#allocation7 + $0x1c] sm:$0xf]
    %v397 = vld [vmem:[#allocation7 + $0x20] sm:$0xf]
    %v398 = vld [vmem:[#allocation7 + $0x24] sm:$0xf]
    %v399 = vld [vmem:[#allocation7 + $0x28] sm:$0xf]
    %v400 = vld [vmem:[#allocation7 + $0x2c] sm:$0xf]
    %v401 = vld [vmem:[#allocation7 + $0x30] sm:$0xf]
    %v402 = vld [vmem:[#allocation7 + $0x34] sm:$0xf]
    %v403 = vld [vmem:[#allocation7 + $0x38] sm:$0xf]
    %v404 = vld [vmem:[#allocation7 + $0x3c] sm:$0xf]
    %v405 = vld [vmem:[%s6] sm:$0x1]
    %v407 = vperm.slane %v405, 0
    %v425 = vunpack.c.l.b16 %v389
    %v426 = vunpack.c.l.b16 %v390
    %v427 = vunpack.c.l.b16 %v391
    %v428 = vunpack.c.l.b16 %v392
    %v429 = vunpack.c.l.b16 %v393
    %v430 = vunpack.c.l.b16 %v394
    %v431 = vunpack.c.l.b16 %v395
    %v432 = vunpack.c.l.b16 %v396
    %v433 = vunpack.c.l.b16 %v397
    %v434 = vunpack.c.l.b16 %v398
    %v435 = vunpack.c.l.b16 %v399
    %v436 = vunpack.c.l.b16 %v400
    %v437 = vunpack.c.l.b16 %v401
    %v438 = vunpack.c.l.b16 %v402
    %v439 = vunpack.c.l.b16 %v403
    %v440 = vunpack.c.l.b16 %v404
    %v441 = vpack.c.b16 %v426, %v425
    %v442 = vpack.c.b16 %v428, %v427
    %v443 = vpack.c.b16 %v430, %v429
    %v444 = vpack.c.b16 %v432, %v431
    %v445 = vpack.c.b16 %v434, %v433
    %v446 = vpack.c.b16 %v436, %v435
    %v447 = vpack.c.b16 %v438, %v437
    %v448 = vpack.c.b16 %v440, %v439
    %457 = vmatpush.bf16.msra.mxu0 %v448
    %458 = vmatpush.bf16.msra.mxu0 %v447
    %459 = vmatpush.bf16.msra.mxu0 %v446
    %460 = vmatpush.bf16.msra.mxu0 %v445
    %461 = vmatpush.bf16.msra.mxu0 %v444
    %462 = vmatpush.bf16.msra.mxu0 %v443
    %463 = vmatpush.bf16.msra.mxu0 %v442
    %464 = vmatpush.bf16.msra.mxu0 %v441
    %465 = vmatmul.bf16.gmra.mxu0 %v388
    %v466 = vpop.f32.mrf.mxu0
    %v467 = vadd.f32 %v407, %v466
    %v468 = vpop.f32.mrf.mxu0
    %469 = vdwg.mxu0
    %v470 = vmax.f32 %v467, 0.0
    %v471 = vpack.c.bf16 %v470, %v470
    %v472 = vld [vmem:[#allocation8] sm:$0xf]
    %v473 = vld [vmem:[#allocation8 + $0x4] sm:$0xf]
    %v474 = vld [vmem:[#allocation8 + $0x8] sm:$0xf]
    %v475 = vld [vmem:[#allocation8 + $0xc] sm:$0xf]
    %v476 = vld [vmem:[#allocation8 + $0x10] sm:$0xf]
    %v477 = vld [vmem:[#allocation8 + $0x14] sm:$0xf]
    %v478 = vld [vmem:[#allocation8 + $0x18] sm:$0xf]
    %v479 = vld [vmem:[#allocation8 + $0x1c] sm:$0xf]
    %v480 = vld [vmem:[#allocation8 + $0x20] sm:$0xf]
    %v481 = vld [vmem:[#allocation8 + $0x24] sm:$0xf]
    %v482 = vld [vmem:[#allocation8 + $0x28] sm:$0xf]
    %v483 = vld [vmem:[#allocation8 + $0x2c] sm:$0xf]
    %v484 = vld [vmem:[#allocation8 + $0x30] sm:$0xf]
    %v485 = vld [vmem:[#allocation8 + $0x34] sm:$0xf]
    %v486 = vld [vmem:[#allocation8 + $0x38] sm:$0xf]
    %v487 = vld [vmem:[#allocation8 + $0x3c] sm:$0xf]
    %v488 = vld [vmem:[%s8] sm:$0x1]
    %v490 = vperm.slane %v488, 0
    %v508 = vunpack.c.l.b16 %v472
    %v509 = vunpack.c.l.b16 %v473
    %v510 = vunpack.c.l.b16 %v474
    %v511 = vunpack.c.l.b16 %v475
    %v512 = vunpack.c.l.b16 %v476
    %v513 = vunpack.c.l.b16 %v477
    %v514 = vunpack.c.l.b16 %v478
    %v515 = vunpack.c.l.b16 %v479
    %v516 = vunpack.c.l.b16 %v480
    %v517 = vunpack.c.l.b16 %v481
    %v518 = vunpack.c.l.b16 %v482
    %v519 = vunpack.c.l.b16 %v483
    %v520 = vunpack.c.l.b16 %v484
    %v521 = vunpack.c.l.b16 %v485
    %v522 = vunpack.c.l.b16 %v486
    %v523 = vunpack.c.l.b16 %v487
    %v524 = vpack.c.b16 %v509, %v508
    %v525 = vpack.c.b16 %v511, %v510
    %v526 = vpack.c.b16 %v513, %v512
    %v527 = vpack.c.b16 %v515, %v514
    %v528 = vpack.c.b16 %v517, %v516
    %v529 = vpack.c.b16 %v519, %v518
    %v530 = vpack.c.b16 %v521, %v520
    %v531 = vpack.c.b16 %v523, %v522
    %540 = vmatpush.bf16.msra.mxu0 %v531
    %541 = vmatpush.bf16.msra.mxu0 %v530
    %542 = vmatpush.bf16.msra.mxu0 %v529
    %543 = vmatpush.bf16.msra.mxu0 %v528
    %544 = vmatpush.bf16.msra.mxu0 %v527
    %545 = vmatpush.bf16.msra.mxu0 %v526
    %546 = vmatpush.bf16.msra.mxu0 %v525
    %547 = vmatpush.bf16.msra.mxu0 %v524
    %548 = vmatmul.bf16.gmra.mxu0 %v471
    %v549 = vpop.f32.mrf.mxu0
    %v550 = vadd.f32 %v490, %v549
    %v551 = vpop.f32.mrf.mxu0
    %552 = vdwg.mxu0
    %553 = vst [vmem:[#allocation10] sm:$0xff] %v550
    // Predicated region
    $region54: #{qnet_forward.1} parent=1 // pred_check
      _
    $region55: #{qnet_forward.1} parent=1 // pred_check_branch
      %555 = sbr.rel (0) target = $region57
    $region56: #{qnet_forward.1} parent=1 // pred_region
      %557 = vsyncadd [#allocation4], 0
      %s559 = sshll.u32 [#allocation10], 4
      %s560 = int_to_ptr.vmem [resolvable:$true] %s559
      %s561 = sshll.u32 %s9, 4
      %s562 = int_to_ptr.hbm [resolvable:$true] %s561
      %564 = dma.vmem_to_hbm [thread:$0]  %s560, 128, %s562, [#allocation4]
    $region57: #{qnet_forward.1} parent=1 // pred_fallthru
      _
    // Predicated region
    $region58: #{qnet_forward.1} parent=1 // pred_check
      _
    $region59: #{qnet_forward.1} parent=1 // pred_check_branch
      %566 = sbr.rel (0) target = $region61
    $region60: #{qnet_forward.1} parent=1 // pred_region
      %568 = dma.done [#allocation4], 128
    $region61: #{qnet_forward.1} parent=1 // pred_fallthru
      _
    %569 = vsyncpa [#allocation3], 1
    %570 = vsyncpa [#allocation6], 1
    %571 = vsyncpa [#allocation9], 1
    %572 = vsyncpa [#allocation4], 1

</llo_original>
